<compile_context>
chip_gen: v5e
topology: v5e:2x2
jax: 0.10.0
libtpu: 0.0.40
codegen_flags: <defaults>
</compile_context>

<pallas_src>
import functools

import jax
import jax.numpy as jnp
from jax.experimental import pallas as pl
from jax.experimental.pallas import tpu as pltpu


def _cdiv(a, b):
    return -(-a // b)


def _round_up(a, m):
    return _cdiv(a, m) * m


def _largest_divisor_leq(n, cap):
    """Largest divisor of n that is <= cap (avoids tail blocks on that axis)."""
    cap = max(1, min(cap, n))
    for d in range(cap, 0, -1):
        if n % d == 0:
            return d
    return 1


def _l2cai_kernel(img_ref, pts_ref,
                  w1_ref,              # fc1 weight               (rc, ic)
                  wp_ref, bp_ref,      # [conv1(BN-folded); fc2]  (rows, pc), (rows, 1)
                  b12_ref,             # fc1.bias + fc2.bias      (rc, 1)
                  w3_ref, b3_ref,      # fc3                      (1, rc), (1, 1)
                  out_ref,             #                          (bb, ic, t_hw)
                  *, ic, rc, ic_pad):
    bb = out_ref.shape[0]

    # Weight tiles are grid-resident; hoist loads out of the batch unroll.
    w1 = w1_ref[...]
    wp = wp_ref[...]
    bp = bp_ref[...]
    b12 = b12_ref[...]
    w3 = w3_ref[...]
    b3 = b3_ref[...]

    for b in range(bb):                                       # static unroll (bb <= 8)
        x_img = img_ref[b]                                    # (ic, t)
        x_pts = pts_ref[b]                                    # (pc, t)

        # One MXU push covers both conv1 (BN folded) and fc2 (shared input).
        yp = jnp.dot(wp, x_pts,
                     preferred_element_type=jnp.float32) + bp             # (rows, t)
        conv = jnp.maximum(yp[:ic, :], 0.0)                   # ReLU(BN(conv1(p)))
        rp = yp[ic_pad:ic_pad + rc, :]                        # fc2(p) (bias in b12)

        ri = jnp.dot(w1, x_img,
                     preferred_element_type=jnp.float32)      # fc1(img) (bias in b12)
        t = jnp.tanh(ri + rp + b12)                           # (rc, t) f32 -> EUP

        att = jax.nn.sigmoid(
            jnp.dot(w3, t, preferred_element_type=jnp.float32) + b3)      # (1, t)

        out_ref[b] = (conv * att).astype(out_ref.dtype)       # lane-dense store


def l2cai_forward(img_feats, point_feats, params, *,
                  t_hw=None, bb=None, vmem_budget_bytes=24 << 20):
    """img_feats: (B, ic, H, W) NCHW; point_feats: (B, pc, H, W) NCHW."""
    B, ic, H, W = img_feats.shape
    Bp, pc, Hp, Wp = point_feats.shape
    assert (B, H, W) == (Bp, Hp, Wp)
    w1, b1, w2, b2, w3, b3, wc, bc = params
    rc = w1.shape[0]
    HW = H * W
    elem = jnp.dtype(img_feats.dtype).itemsize

    # ---------------- tile selection (HBM-bandwidth-bound kernel) ----------
    # Per-step traffic per lane per batch row: img in + pts in + out.
    bytes_per_lane = elem * (2 * ic + pc)
    # Double-buffered activation footprint must fit the scoped-VMEM budget
    # (weights are tiny; 32 MiB limit below leaves headroom on all gens).
    max_lanes = max(128, vmem_budget_bytes // (2 * bytes_per_lane))

    TARGET_LANES = 16384       # amortizes the ~0.35us/step overhead on v5e..v7x
    MIN_SEG_LANES = 1024       # >= 4 KiB f32 strided-DMA segments (HBM efficiency)

    if t_hw is None:
        t_hw = TARGET_LANES
    t_hw = min(t_hw, max_lanes)

    if t_hw >= HW:
        t_hw = HW                               # full-extent lane block (any size ok)
    else:
        t_hw = max(128, (t_hw // 128) * 128)    # partial blocks: multiple of 128
        if HW >= MIN_SEG_LANES:
            t_hw = max(t_hw, MIN_SEG_LANES)     # keep DMA segments long

    # Batch-block small images so per-step bytes reach a few hundred KiB.
    # bb is always a divisor of B (no batch-axis tail blocks).
    if bb is None:
        if t_hw == HW and HW < TARGET_LANES:
            cap = min(B, 8,
                      max(1, TARGET_LANES // max(HW, 1)),
                      max(1, max_lanes // max(HW, 1)))
        else:
            cap = 1
    else:
        cap = min(bb, B, 8)
    bb = _largest_divisor_leq(B, cap)

    # Keep >= 2 steps along a "parallel" grid axis so both v7x TensorCores get
    # work (and the DMA pipeline has something to overlap with).
    n_b, n_s = B // bb, _cdiv(HW, t_hw)
    if n_b * n_s == 1:
        if B > 1:
            bb = _largest_divisor_leq(B, _cdiv(B, 2))
        elif HW >= 2 * MIN_SEG_LANES:
            t_hw = max(128, ((HW // 2) // 128) * 128)
        n_b, n_s = B // bb, _cdiv(HW, t_hw)
    grid = (n_b, n_s)

    # NCHW -> (B, C, H*W): pure reshape, no HBM transpose.
    img3d = img_feats.reshape(B, ic, HW)
    pts3d = point_feats.reshape(B, pc, HW)

    # Fuse conv1 (BN-folded) and fc2 (same input) into one stacked weight/bias.
    # Pad the conv1 rows (and the total) to multiples of 8 sublanes so the
    # yp[:ic] / yp[ic_pad:] row split lands on (8,128)-tile boundaries.
    ic_pad = _round_up(ic, 8)
    rows = _round_up(ic_pad + rc, 8)
    wdt = wc.dtype
    wp = (jnp.zeros((rows, pc), wdt)
          .at[:ic].set(wc)
          .at[ic_pad:ic_pad + rc].set(w2))
    bp = jnp.zeros((rows, 1), wdt).at[:ic, 0].set(bc)
    b12 = (b1 + b2)[:, None]                                  # (rc, 1)
    w3m = w3.reshape(1, rc)
    b3m = b3.reshape(1, 1)

    full = lambda a: pl.BlockSpec(a.shape, lambda bi, j: (0,) * a.ndim)

    cost = pl.CostEstimate(
        flops=2 * B * HW * (ic * pc + rc * ic + rc * pc + rc),
        transcendentals=B * HW * (rc + 1),                    # tanh + sigmoid
        bytes_accessed=elem * B * HW * (2 * ic + pc),
    )

    kernel = functools.partial(_l2cai_kernel, ic=ic, rc=rc, ic_pad=ic_pad)

    out3d = pl.pallas_call(
        kernel,
        out_shape=jax.ShapeDtypeStruct((B, ic, HW), img_feats.dtype),
        grid_spec=pltpu.PrefetchScalarGridSpec(
            num_scalar_prefetch=0,
            grid=grid,
            in_specs=[
                pl.BlockSpec((bb, ic, t_hw), lambda bi, j: (bi, 0, j)),
                pl.BlockSpec((bb, pc, t_hw), lambda bi, j: (bi, 0, j)),
                full(w1), full(wp), full(bp), full(b12), full(w3m), full(b3m),
            ],
            out_specs=pl.BlockSpec((bb, ic, t_hw), lambda bi, j: (bi, 0, j)),
        ),
        compiler_params=pltpu.CompilerParams(
            dimension_semantics=("parallel", "parallel"),
            vmem_limit_bytes=32 * 1024 * 1024),
        cost_estimate=cost,
    )(img3d, pts3d, w1, wp, bp, b12, w3m, b3m)

    return out3d.reshape(B, ic, H, W)


def make_params(key, ic, pc):
    """Deterministic synthetic parameters in PyTorch 1x1-conv layout (Cout, Cin)."""
    rc = ic // 4
    ks = jax.random.split(key, 10)
    s = 0.1
    w1 = s * jax.random.normal(ks[0], (rc, ic), jnp.float32)
    b1 = s * jax.random.normal(ks[1], (rc,), jnp.float32)
    w2 = s * jax.random.normal(ks[2], (rc, pc), jnp.float32)
    b2 = s * jax.random.normal(ks[3], (rc,), jnp.float32)
    w3 = s * jax.random.normal(ks[4], (1, rc), jnp.float32)
    b3 = s * jax.random.normal(ks[5], (1,), jnp.float32)
    wc = s * jax.random.normal(ks[6], (ic, pc), jnp.float32)
    bc = s * jax.random.normal(ks[7], (ic,), jnp.float32)
    # BatchNorm2d(ic) eval-mode parameters, folded into conv1.
    gamma = 1.0 + 0.05 * jax.random.normal(ks[8], (ic,), jnp.float32)
    beta = 0.05 * jax.random.normal(ks[9], (ic,), jnp.float32)
    running_mean = jnp.zeros((ic,), jnp.float32)
    running_var = jnp.ones((ic,), jnp.float32)
    eps = 1e-5
    scale = gamma / jnp.sqrt(running_var + eps)
    wc_f = wc * scale[:, None]
    bc_f = (bc - running_mean) * scale + beta
    return (w1, b1, w2, b2, w3, b3, wc_f, bc_f)


def _reference(img_feats, point_feats, params):
    """Plain-JAX reference of the same math (sanity check)."""
    w1, b1, w2, b2, w3, b3, wc, bc = params
    conv1x1 = lambda w, b, x: (jnp.einsum('oc,bchw->bohw', w, x)
                               + b[None, :, None, None])
    ri = conv1x1(w1, b1, img_feats)
    rp = conv1x1(w2, b2, point_feats)
    att = jax.nn.sigmoid(conv1x1(w3, b3, jnp.tanh(ri + rp)))
    conv = jnp.maximum(conv1x1(wc, bc, point_feats), 0.0)
    return conv * att


if __name__ == "__main__":
    key = jax.random.PRNGKey(0)
    ic, pc = 16, 8                        # channels = (ic, pc); rc = ic // 4 = 4
    B, H, W = 2, 16, 16

    k_img, k_pts, k_par, k_img2, k_pts2, k_img3, k_pts3 = jax.random.split(key, 7)
    img_feats = jax.random.normal(k_img, (B, ic, H, W), jnp.float32)
    point_feats = jax.random.normal(k_pts, (B, pc, H, W), jnp.float32)
    params = make_params(k_par, ic, pc)
    ref = _reference(img_feats, point_feats, params)

    # 1) Default tile selection: small image -> full-HW lane block, bb adjusted
    #    so the grid keeps >= 2 parallel steps (here grid = (2, 1)).
    out = l2cai_forward(img_feats, point_feats, params)
    jax.block_until_ready(out)
    assert out.shape == (B, ic, H, W)
    assert jnp.allclose(out, ref, atol=2e-5, rtol=2e-5)

    # 2) Explicit small spatial tile: grid = (2, 2), exercises spatial tiling.
    out_s = l2cai_forward(img_feats, point_feats, params, t_hw=128)
    jax.block_until_ready(out_s)
    assert jnp.allclose(out_s, ref, atol=2e-5, rtol=2e-5)

    # 3) Batch-blocked path (bb > 1, static unroll inside the kernel).
    img_b = jax.random.normal(k_img3, (6, ic, H, W), jnp.float32)
    pts_b = jax.random.normal(k_pts3, (6, pc, H, W), jnp.float32)
    out_b = l2cai_forward(img_b, pts_b, params)           # bb = 3, grid = (2, 1)
    jax.block_until_ready(out_b)
    assert jnp.allclose(out_b, _reference(img_b, pts_b, params),
                        atol=2e-5, rtol=2e-5)

    # 4) Spatial tail: H*W = 144 is not a multiple of the 128-lane tile.
    img_t = jax.random.normal(k_img2, (1, ic, 12, 12), jnp.float32)
    pts_t = jax.random.normal(k_pts2, (1, pc, 12, 12), jnp.float32)
    out_t = l2cai_forward(img_t, pts_t, params, t_hw=128)
    jax.block_until_ready(out_t)
    assert jnp.allclose(out_t, _reference(img_t, pts_t, params),
                        atol=2e-5, rtol=2e-5)

    # 5) bf16 activation path (half the HBM traffic; math still f32 inside).
    out_bf = l2cai_forward(img_feats.astype(jnp.bfloat16),
                           point_feats.astype(jnp.bfloat16), params)
    jax.block_until_ready(out_bf)
    assert out_bf.dtype == jnp.bfloat16
    assert jnp.allclose(out_bf.astype(jnp.float32), ref, atol=0.1, rtol=0.1)

    print("KERNEL_OK")
</pallas_src>

<mosaic_0001>
module attributes {stable_mosaic.version = 11 : i64} {
  func.func @_l2cai_kernel(%arg0: i32, %arg1: i32, %arg2: memref<1x16x256xf32, #tpu.memory_space<vmem>>, %arg3: memref<1x8x256xf32, #tpu.memory_space<vmem>>, %arg4: memref<4x16xf32, #tpu.memory_space<vmem>>, %arg5: memref<24x8xf32, #tpu.memory_space<vmem>>, %arg6: memref<24x1xf32, #tpu.memory_space<vmem>>, %arg7: memref<4x1xf32, #tpu.memory_space<vmem>>, %arg8: memref<1x4xf32, #tpu.memory_space<vmem>>, %arg9: memref<1x1xf32, #tpu.memory_space<vmem>>, %arg10: memref<1x16x256xf32, #tpu.memory_space<vmem>>) attributes {dimension_semantics = [#tpu.dimension_semantics<parallel>, #tpu.dimension_semantics<parallel>], iteration_bounds = array<i64: 2, 1>, scalar_prefetch = 0 : i64, scratch_operands = 0 : i64, tpu.core_type = #tpu.core_type<tc>, window_params = [{transform_indices = @transform_0, window_bounds = array<i64: 1, 16, 256>}, {transform_indices = @transform_1, window_bounds = array<i64: 1, 8, 256>}, {pipeline_mode = #tpu.pipeline_mode<synchronous>, transform_indices = @transform_2, window_bounds = array<i64: 4, 16>}, {pipeline_mode = #tpu.pipeline_mode<synchronous>, transform_indices = @transform_3, window_bounds = array<i64: 24, 8>}, {pipeline_mode = #tpu.pipeline_mode<synchronous>, transform_indices = @transform_4, window_bounds = array<i64: 24, 1>}, {pipeline_mode = #tpu.pipeline_mode<synchronous>, transform_indices = @transform_5, window_bounds = array<i64: 4, 1>}, {pipeline_mode = #tpu.pipeline_mode<synchronous>, transform_indices = @transform_6, window_bounds = array<i64: 1, 4>}, {pipeline_mode = #tpu.pipeline_mode<synchronous>, transform_indices = @transform_7, window_bounds = array<i64: 1, 1>}, {transform_indices = @transform_8, window_bounds = array<i64: 1, 16, 256>}]} {
    %c0 = arith.constant 0 : index
    %c0_0 = arith.constant 0 : index
    %0 = vector.load %arg4[%c0, %c0_0] : memref<4x16xf32, #tpu.memory_space<vmem>>, vector<4x16xf32>
    %c0_1 = arith.constant 0 : index
    %c0_2 = arith.constant 0 : index
    %1 = vector.load %arg5[%c0_1, %c0_2] : memref<24x8xf32, #tpu.memory_space<vmem>>, vector<24x8xf32>
    %c0_3 = arith.constant 0 : index
    %c0_4 = arith.constant 0 : index
    %2 = vector.load %arg6[%c0_3, %c0_4] : memref<24x1xf32, #tpu.memory_space<vmem>>, vector<24x1xf32>
    %c0_5 = arith.constant 0 : index
    %c0_6 = arith.constant 0 : index
    %3 = vector.load %arg7[%c0_5, %c0_6] : memref<4x1xf32, #tpu.memory_space<vmem>>, vector<4x1xf32>
    %c0_7 = arith.constant 0 : index
    %c0_8 = arith.constant 0 : index
    %4 = vector.load %arg8[%c0_7, %c0_8] : memref<1x4xf32, #tpu.memory_space<vmem>>, vector<1x4xf32>
    %c0_9 = arith.constant 0 : index
    %c0_10 = arith.constant 0 : index
    %5 = vector.load %arg9[%c0_9, %c0_10] : memref<1x1xf32, #tpu.memory_space<vmem>>, vector<1x1xf32>
    %c0_11 = arith.constant 0 : index
    %c0_12 = arith.constant 0 : index
    %c0_13 = arith.constant 0 : index
    %6 = vector.load %arg2[%c0_11, %c0_12, %c0_13] : memref<1x16x256xf32, #tpu.memory_space<vmem>>, vector<1x16x256xf32>
    %7 = vector.shape_cast %6 : vector<1x16x256xf32> to vector<16x256xf32>
    %c0_14 = arith.constant 0 : index
    %c0_15 = arith.constant 0 : index
    %c0_16 = arith.constant 0 : index
    %8 = vector.load %arg3[%c0_14, %c0_15, %c0_16] : memref<1x8x256xf32, #tpu.memory_space<vmem>>, vector<1x8x256xf32>
    %9 = vector.shape_cast %8 : vector<1x8x256xf32> to vector<8x256xf32>
    %cst = arith.constant dense<0.000000e+00> : vector<24x256xf32>
    %10 = tpu.matmul %1, %9, %cst {dimension_numbers = #tpu.dot_dimension_numbers<[1], [0], [0], [1], [0, 0, 1, 1], [], []>} : vector<24x8xf32>, vector<8x256xf32>, vector<24x256xf32> -> vector<24x256xf32>
    %11 = vector.broadcast %2 : vector<24x1xf32> to vector<24x256xf32>
    %12 = arith.addf %10, %11 : vector<24x256xf32>
    %13 = vector.extract_strided_slice %12 {offsets = [0, 0], sizes = [16, 256], strides = [1, 1]} : vector<24x256xf32> to vector<16x256xf32>
    %cst_17 = arith.constant 0.000000e+00 : f32
    %14 = vector.broadcast %cst_17 : f32 to vector<16x256xf32>
    %15 = arith.maximumf %13, %14 : vector<16x256xf32>
    %16 = vector.extract_strided_slice %12 {offsets = [16, 0], sizes = [4, 256], strides = [1, 1]} : vector<24x256xf32> to vector<4x256xf32>
    %cst_18 = arith.constant dense<0.000000e+00> : vector<4x256xf32>
    %17 = tpu.matmul %0, %7, %cst_18 {dimension_numbers = #tpu.dot_dimension_numbers<[1], [0], [0], [1], [0, 0, 1, 1], [], []>} : vector<4x16xf32>, vector<16x256xf32>, vector<4x256xf32> -> vector<4x256xf32>
    %18 = arith.addf %17, %16 : vector<4x256xf32>
    %19 = vector.broadcast %3 : vector<4x1xf32> to vector<4x256xf32>
    %20 = arith.addf %18, %19 : vector<4x256xf32>
    %21 = math.tanh %20 : vector<4x256xf32>
    %cst_19 = arith.constant dense<0.000000e+00> : vector<1x256xf32>
    %22 = tpu.matmul %4, %21, %cst_19 {dimension_numbers = #tpu.dot_dimension_numbers<[1], [0], [0], [1], [0, 0, 1, 1], [], []>} : vector<1x4xf32>, vector<4x256xf32>, vector<1x256xf32> -> vector<1x256xf32>
    %23 = vector.broadcast %5 : vector<1x1xf32> to vector<1x256xf32>
    %24 = arith.addf %22, %23 : vector<1x256xf32>
    %25 = arith.negf %24 : vector<1x256xf32>
    %26 = math.exp %25 : vector<1x256xf32>
    %cst_20 = arith.constant 1.000000e+00 : f32
    %27 = vector.broadcast %cst_20 : f32 to vector<1x256xf32>
    %28 = arith.addf %27, %26 : vector<1x256xf32>
    %29 = arith.divf %27, %28 : vector<1x256xf32>
    %30 = vector.broadcast %29 : vector<1x256xf32> to vector<16x256xf32>
    %31 = arith.mulf %15, %30 : vector<16x256xf32>
    %c0_21 = arith.constant 0 : index
    %c0_22 = arith.constant 0 : index
    %c0_23 = arith.constant 0 : index
    %32 = vector.load %arg10[%c0_21, %c0_22, %c0_23] : memref<1x16x256xf32, #tpu.memory_space<vmem>>, vector<1x16x256xf32>
    %33 = vector.shape_cast %32 : vector<1x16x256xf32> to vector<16x256xf32>
    %34 = vector.shape_cast %31 : vector<16x256xf32> to vector<1x16x256xf32>
    tpu.vector_store %arg10[%c0_21, %c0_22, %c0_23], %34 {strides = array<i32>} : memref<1x16x256xf32, #tpu.memory_space<vmem>>, vector<1x16x256xf32>,
    return
  }
  func.func @transform_0(%arg0: i32, %arg1: i32) -> (i32, i32, i32) {
    %c0_i32 = arith.constant 0 : i32
    %c0_i32_0 = arith.constant 0 : i32
    return %arg0, %c0_i32, %arg1 : i32, i32, i32
  }
  func.func @transform_1(%arg0: i32, %arg1: i32) -> (i32, i32, i32) {
    %c0_i32 = arith.constant 0 : i32
    %c0_i32_0 = arith.constant 0 : i32
    return %arg0, %c0_i32, %arg1 : i32, i32, i32
  }
  func.func @transform_2(%arg0: i32, %arg1: i32) -> (i32, i32) {
    %c0_i32 = arith.constant 0 : i32
    %c0_i32_0 = arith.constant 0 : i32
    %c0_i32_1 = arith.constant 0 : i32
    return %c0_i32, %c0_i32_0 : i32, i32
  }
  func.func @transform_3(%arg0: i32, %arg1: i32) -> (i32, i32) {
    %c0_i32 = arith.constant 0 : i32
    %c0_i32_0 = arith.constant 0 : i32
    %c0_i32_1 = arith.constant 0 : i32
    return %c0_i32, %c0_i32_0 : i32, i32
  }
  func.func @transform_4(%arg0: i32, %arg1: i32) -> (i32, i32) {
    %c0_i32 = arith.constant 0 : i32
    %c0_i32_0 = arith.constant 0 : i32
    %c0_i32_1 = arith.constant 0 : i32
    return %c0_i32, %c0_i32_0 : i32, i32
  }
  func.func @transform_5(%arg0: i32, %arg1: i32) -> (i32, i32) {
    %c0_i32 = arith.constant 0 : i32
    %c0_i32_0 = arith.constant 0 : i32
    %c0_i32_1 = arith.constant 0 : i32
    return %c0_i32, %c0_i32_0 : i32, i32
  }
  func.func @transform_6(%arg0: i32, %arg1: i32) -> (i32, i32) {
    %c0_i32 = arith.constant 0 : i32
    %c0_i32_0 = arith.constant 0 : i32
    %c0_i32_1 = arith.constant 0 : i32
    return %c0_i32, %c0_i32_0 : i32, i32
  }
  func.func @transform_7(%arg0: i32, %arg1: i32) -> (i32, i32) {
    %c0_i32 = arith.constant 0 : i32
    %c0_i32_0 = arith.constant 0 : i32
    %c0_i32_1 = arith.constant 0 : i32
    return %c0_i32, %c0_i32_0 : i32, i32
  }
  func.func @transform_8(%arg0: i32, %arg1: i32) -> (i32, i32, i32) {
    %c0_i32 = arith.constant 0 : i32
    %c0_i32_0 = arith.constant 0 : i32
    return %arg0, %c0_i32, %arg1 : i32, i32, i32
  }
}

</mosaic_0001>

<llo_original>
// kernel: tpu_custom_call.1
$region0: #{tpu_custom_call.1}
  #allocation0 [shape = 'u32[]', space=smem, size = 0x4, offset = 0x4, fixed_abs, tag = 'smem constant byte address 0x4 - core index']
  #allocation1 [shape = 'u32[72,128]{1,0:T(1,128)}', space=vmem, size = 0x9000, scoped, tag = 'internal scratch']
  #allocation2 [shape = 'f32[1,1]{1,0:T(1,128)S(1)}', space=vmem, size = 0x200, scoped, tag = 'scoped memory for tpu_custom_call.1']
  %s0 = inlined_call_operand.hbm [shape: f32[2,16,256], index: 0, kind: input, shape index: {}]
  %s1 = inlined_call_operand.vmem [shape: f32[2,8,256], index: 1, kind: input, shape index: {}]
  %s2 = inlined_call_operand.vmem [shape: f32[4,16], index: 2, kind: input, shape index: {}]
  %s3 = inlined_call_operand.vmem [shape: f32[24,8], index: 3, kind: input, shape index: {}]
  %s4 = inlined_call_operand.vmem [shape: f32[24,1], index: 4, kind: input, shape index: {}]
  %s5 = inlined_call_operand.vmem [shape: f32[4,1], index: 5, kind: input, shape index: {}]
  %s6 = inlined_call_operand.vmem [shape: f32[1,4], index: 6, kind: input, shape index: {}]
  %s7 = inlined_call_operand.<no memory space> [shape: f32[1,1], index: 7, kind: input, shape index: {}]
  %s8 = inlined_call_operand.hbm [shape: f32[2,16,256], index: 8, kind: output, shape index: {}]
  %s9 = sld [smem:[#allocation0]]
  $region69: #{tpu_custom_call.1} parent=0
    _
  %s11 = ssub.s32 1, %s9
  %s12 = scalar_select 0, %s11, %s9
  %v13 = vstv %s7
  %14 = vst [vmem:[#allocation2] sm:$0x1] %v13
  $region1: #{tpu_custom_call.1} parent=0
    #allocation3 [shape = 'u8[32768]{0}', space=vmem, size = 0x8000, scoped, tag = 'input window, operand 0']
    #allocation4 [shape = 's32[2]{0}', space=sflag, size = 0x8, scoped, tag = 'scoped memory for tpu_custom_call.1']
    #allocation5 [shape = 's32[2]{0}', space=sflag, size = 0x8, scoped, tag = 'scoped memory for tpu_custom_call.1']
    #allocation6 [shape = 'u8[32768]{0}', space=vmem, size = 0x8000, scoped, tag = 'output window, operand 0']
    %15 = vsyncpa [#allocation4], 0
    %s16 = scalar_lea.sflag [#allocation4], 1
    %17 = vsyncpa %s16, 0
    %18 = vsyncpa [#allocation5], 0
    %s19 = scalar_lea.sflag [#allocation5], 1
    %20 = vsyncpa %s19, 0
    loop: start=0, step=1, limit=4
    $region2: #{tpu_custom_call.1} parent=1 // loop_pre_header
      _
    $region3: #{tpu_custom_call.1} parent=1 // loop_header
      %s22 = sphi 0, %s26
      %p23 = scmp.ge.s32.totalorder %s22, 4
      %s29 = sphi 0, %s41
      %s30 = sphi 0, %s37
      %s31 = sphi 0, %s29
      %s32 = sphi 0, %s30
      %s33 = sphi 0, %s31
      %s34 = sphi 0, %s32
      %s46 = sphi 0, %s48
      %s49 = sphi 0, %s46
      %s50 = sphi 0, %s49
      %s66 = sphi 0, %s50
      %s74 = sphi 0, %s76
      %s77 = sphi 0, %s74
      %s78 = sphi 0, %s77
      %s94 = sphi 0, %s78
      %s98 = sphi 0, %s98
      %s100 = sphi 0, %s98
      %s101 = sphi 0, %s100
      %s115 = sphi 0, %s101
      %s119 = sphi 0, %s119
      %s121 = sphi 0, %s119
      %s122 = sphi 0, %s121
      %s136 = sphi 0, %s122
      %s140 = sphi 0, %s140
      %s142 = sphi 0, %s140
      %s143 = sphi 0, %s142
      %s157 = sphi 0, %s143
      %s161 = sphi 0, %s161
      %s163 = sphi 0, %s161
      %s164 = sphi 0, %s163
      %s178 = sphi 0, %s164
      %s182 = sphi 0, %s182
      %s184 = sphi 0, %s182
      %s185 = sphi 0, %s184
      %s199 = sphi 0, %s185
      %s203 = sphi 0, %s203
      %s205 = sphi 0, %s203
      %s206 = sphi 0, %s205
      %s220 = sphi 0, %s206
      %s228 = sphi 0, %s230
      %s231 = sphi 0, %s228
      %s232 = sphi 0, %s231
      %s248 = sphi 0, %s232
    $region4: #{tpu_custom_call.1} parent=1 // loop_header_branch
      %25 = sbr.rel (%p23) target = $region8
    $region5: #{tpu_custom_call.1} parent=1 // loop_body
      %s27 = ssub.s32 %s22, 1
      %s28 = ssub.s32 %s22, 2
      %s35 = sadd.s32 1, %s30
      %p36 = scmp.ge.s32.totalorder %s35, 1
      %s37 = scalar_select %p36, 0, %s35
      %s38 = sadd.s32 1, %s29
      %s39 = scalar_select %p36, %s38, %s29
      %p40 = scmp.ge.s32.totalorder %s39, 2
      %s41 = scalar_select %p40, 0, %s39
      %s42 = ssub.s32 %s29, %s41
      %s43 = ssub.s32 %s30, %s37
      %s44 = sor.u32 %s42, %s43
      %p45 = scmp.eq.s32.totalorder %s44, 0
      %s47 = sadd.s32 %s46, 1
      %s48 = scalar_select %p45, %s46, %s47
      %p51 = pneg %p45
      %p52 = scmp.eq.s32.totalorder %s22, 1
      %p53 = por %p51, %p52
      %p54 = scmp.ne.s32.totalorder %s46, %s49
      %p55 = scmp.eq.s32.totalorder %s22, 0
      %p56 = por %p54, %p55
      %p57 = scmp.ne.s32.totalorder %s46, %s49
      %p58 = scmp.eq.s32.totalorder %s27, 1
      %p59 = por %p57, %p58
      %p60 = scmp.ne.s32.totalorder %s49, %s50
      %p61 = scmp.eq.s32.totalorder %s27, 0
      %p62 = por %p60, %p61
      %p63 = scmp.ne.s32.totalorder %s49, %s50
      %p64 = scmp.eq.s32.totalorder %s28, 1
      %p65 = por %p63, %p64
      %p67 = scmp.ne.s32.totalorder %s50, %s66
      %p68 = scmp.eq.s32.totalorder %s28, 0
      %p69 = por %p67, %p68
      %s70 = ssub.s32 %s29, %s41
      %s71 = ssub.s32 %s30, %s37
      %s72 = sor.u32 %s70, %s71
      %p73 = scmp.eq.s32.totalorder %s72, 0
      %s75 = sadd.s32 %s74, 1
      %s76 = scalar_select %p73, %s74, %s75
      %p79 = pneg %p73
      %p80 = scmp.eq.s32.totalorder %s22, 1
      %p81 = por %p79, %p80
      %p82 = scmp.ne.s32.totalorder %s74, %s77
      %p83 = scmp.eq.s32.totalorder %s22, 0
      %p84 = por %p82, %p83
      %p85 = scmp.ne.s32.totalorder %s74, %s77
      %p86 = scmp.eq.s32.totalorder %s27, 1
      %p87 = por %p85, %p86
      %p88 = scmp.ne.s32.totalorder %s77, %s78
      %p89 = scmp.eq.s32.totalorder %s27, 0
      %p90 = por %p88, %p89
      %p91 = scmp.ne.s32.totalorder %s77, %s78
      %p92 = scmp.eq.s32.totalorder %s28, 1
      %p93 = por %p91, %p92
      %p95 = scmp.ne.s32.totalorder %s78, %s94
      %p96 = scmp.eq.s32.totalorder %s28, 0
      %p97 = por %p95, %p96
      %s99 = sadd.s32 %s98, 1
      %p102 = scmp.eq.s32.totalorder %s22, 1
      %p103 = scmp.ne.s32.totalorder %s98, %s100
      %p104 = scmp.eq.s32.totalorder %s22, 0
      %p105 = por %p103, %p104
      %p106 = scmp.ne.s32.totalorder %s98, %s100
      %p107 = scmp.eq.s32.totalorder %s27, 1
      %p108 = por %p106, %p107
      %p109 = scmp.ne.s32.totalorder %s100, %s101
      %p110 = scmp.eq.s32.totalorder %s27, 0
      %p111 = por %p109, %p110
      %p112 = scmp.ne.s32.totalorder %s100, %s101
      %p113 = scmp.eq.s32.totalorder %s28, 1
      %p114 = por %p112, %p113
      %p116 = scmp.ne.s32.totalorder %s101, %s115
      %p117 = scmp.eq.s32.totalorder %s28, 0
      %p118 = por %p116, %p117
      %s120 = sadd.s32 %s119, 1
      %p123 = scmp.eq.s32.totalorder %s22, 1
      %p124 = scmp.ne.s32.totalorder %s119, %s121
      %p125 = scmp.eq.s32.totalorder %s22, 0
      %p126 = por %p124, %p125
      %p127 = scmp.ne.s32.totalorder %s119, %s121
      %p128 = scmp.eq.s32.totalorder %s27, 1
      %p129 = por %p127, %p128
      %p130 = scmp.ne.s32.totalorder %s121, %s122
      %p131 = scmp.eq.s32.totalorder %s27, 0
      %p132 = por %p130, %p131
      %p133 = scmp.ne.s32.totalorder %s121, %s122
      %p134 = scmp.eq.s32.totalorder %s28, 1
      %p135 = por %p133, %p134
      %p137 = scmp.ne.s32.totalorder %s122, %s136
      %p138 = scmp.eq.s32.totalorder %s28, 0
      %p139 = por %p137, %p138
      %s141 = sadd.s32 %s140, 1
      %p144 = scmp.eq.s32.totalorder %s22, 1
      %p145 = scmp.ne.s32.totalorder %s140, %s142
      %p146 = scmp.eq.s32.totalorder %s22, 0
      %p147 = por %p145, %p146
      %p148 = scmp.ne.s32.totalorder %s140, %s142
      %p149 = scmp.eq.s32.totalorder %s27, 1
      %p150 = por %p148, %p149
      %p151 = scmp.ne.s32.totalorder %s142, %s143
      %p152 = scmp.eq.s32.totalorder %s27, 0
      %p153 = por %p151, %p152
      %p154 = scmp.ne.s32.totalorder %s142, %s143
      %p155 = scmp.eq.s32.totalorder %s28, 1
      %p156 = por %p154, %p155
      %p158 = scmp.ne.s32.totalorder %s143, %s157
      %p159 = scmp.eq.s32.totalorder %s28, 0
      %p160 = por %p158, %p159
      %s162 = sadd.s32 %s161, 1
      %p165 = scmp.eq.s32.totalorder %s22, 1
      %p166 = scmp.ne.s32.totalorder %s161, %s163
      %p167 = scmp.eq.s32.totalorder %s22, 0
      %p168 = por %p166, %p167
      %p169 = scmp.ne.s32.totalorder %s161, %s163
      %p170 = scmp.eq.s32.totalorder %s27, 1
      %p171 = por %p169, %p170
      %p172 = scmp.ne.s32.totalorder %s163, %s164
      %p173 = scmp.eq.s32.totalorder %s27, 0
      %p174 = por %p172, %p173
      %p175 = scmp.ne.s32.totalorder %s163, %s164
      %p176 = scmp.eq.s32.totalorder %s28, 1
      %p177 = por %p175, %p176
      %p179 = scmp.ne.s32.totalorder %s164, %s178
      %p180 = scmp.eq.s32.totalorder %s28, 0
      %p181 = por %p179, %p180
      %s183 = sadd.s32 %s182, 1
      %p186 = scmp.eq.s32.totalorder %s22, 1
      %p187 = scmp.ne.s32.totalorder %s182, %s184
      %p188 = scmp.eq.s32.totalorder %s22, 0
      %p189 = por %p187, %p188
      %p190 = scmp.ne.s32.totalorder %s182, %s184
      %p191 = scmp.eq.s32.totalorder %s27, 1
      %p192 = por %p190, %p191
      %p193 = scmp.ne.s32.totalorder %s184, %s185
      %p194 = scmp.eq.s32.totalorder %s27, 0
      %p195 = por %p193, %p194
      %p196 = scmp.ne.s32.totalorder %s184, %s185
      %p197 = scmp.eq.s32.totalorder %s28, 1
      %p198 = por %p196, %p197
      %p200 = scmp.ne.s32.totalorder %s185, %s199
      %p201 = scmp.eq.s32.totalorder %s28, 0
      %p202 = por %p200, %p201
      %s204 = sadd.s32 %s203, 1
      %p207 = scmp.eq.s32.totalorder %s22, 1
      %p208 = scmp.ne.s32.totalorder %s203, %s205
      %p209 = scmp.eq.s32.totalorder %s22, 0
      %p210 = por %p208, %p209
      %p211 = scmp.ne.s32.totalorder %s203, %s205
      %p212 = scmp.eq.s32.totalorder %s27, 1
      %p213 = por %p211, %p212
      %p214 = scmp.ne.s32.totalorder %s205, %s206
      %p215 = scmp.eq.s32.totalorder %s27, 0
      %p216 = por %p214, %p215
      %p217 = scmp.ne.s32.totalorder %s205, %s206
      %p218 = scmp.eq.s32.totalorder %s28, 1
      %p219 = por %p217, %p218
      %p221 = scmp.ne.s32.totalorder %s206, %s220
      %p222 = scmp.eq.s32.totalorder %s28, 0
      %p223 = por %p221, %p222
      %s224 = ssub.s32 %s29, %s41
      %s225 = ssub.s32 %s30, %s37
      %s226 = sor.u32 %s224, %s225
      %p227 = scmp.eq.s32.totalorder %s226, 0
      %s229 = sadd.s32 %s228, 1
      %s230 = scalar_select %p227, %s228, %s229
      %p233 = pneg %p227
      %p234 = scmp.eq.s32.totalorder %s22, 1
      %p235 = por %p233, %p234
      %p236 = scmp.ne.s32.totalorder %s228, %s231
      %p237 = scmp.eq.s32.totalorder %s22, 0
      %p238 = por %p236, %p237
      %p239 = scmp.ne.s32.totalorder %s228, %s231
      %p240 = scmp.eq.s32.totalorder %s27, 1
      %p241 = por %p239, %p240
      %p242 = scmp.ne.s32.totalorder %s231, %s232
      %p243 = scmp.eq.s32.totalorder %s27, 0
      %p244 = por %p242, %p243
      %p245 = scmp.ne.s32.totalorder %s231, %s232
      %p246 = scmp.eq.s32.totalorder %s28, 1
      %p247 = por %p245, %p246
      %p249 = scmp.ne.s32.totalorder %s232, %s248
      %p250 = scmp.eq.s32.totalorder %s28, 0
      %p251 = por %p249, %p250
      %p252 = scmp.le.s32.totalorder 1, %s22
      %p253 = scmp.lt.s32.totalorder %s22, 3
      %p254 = pnand %p252, %p253
      %p255 = pneg %p254
      // Predicated region
      $region9: #{tpu_custom_call.1} parent=5 // pred_check
        _
      $region10: #{tpu_custom_call.1} parent=5 // pred_check_branch
        %257 = sbr.rel (%p254) target = $region12
      $region11: #{tpu_custom_call.1} parent=5 // pred_region
        %s258 = ssub.s32 %s22, 1
        // Predicated region
        $region13: #{tpu_custom_call.1} parent=11 // pred_check
          %p259 = pneg %p111
        $region14: #{tpu_custom_call.1} parent=11 // pred_check_branch
          %261 = sbr.rel (%p259) target = $region16
        $region15: #{tpu_custom_call.1} parent=11 // pred_region
          _
        $region16: #{tpu_custom_call.1} parent=11 // pred_fallthru
          _
        // Predicated region
        $region17: #{tpu_custom_call.1} parent=11 // pred_check
          %p262 = pneg %p132
        $region18: #{tpu_custom_call.1} parent=11 // pred_check_branch
          %264 = sbr.rel (%p262) target = $region20
        $region19: #{tpu_custom_call.1} parent=11 // pred_region
          _
        $region20: #{tpu_custom_call.1} parent=11 // pred_fallthru
          _
        // Predicated region
        $region21: #{tpu_custom_call.1} parent=11 // pred_check
          %p265 = pneg %p153
        $region22: #{tpu_custom_call.1} parent=11 // pred_check_branch
          %267 = sbr.rel (%p265) target = $region24
        $region23: #{tpu_custom_call.1} parent=11 // pred_region
          _
        $region24: #{tpu_custom_call.1} parent=11 // pred_fallthru
          _
        // Predicated region
        $region25: #{tpu_custom_call.1} parent=11 // pred_check
          %p268 = pneg %p174
        $region26: #{tpu_custom_call.1} parent=11 // pred_check_branch
          %270 = sbr.rel (%p268) target = $region28
        $region27: #{tpu_custom_call.1} parent=11 // pred_region
          _
        $region28: #{tpu_custom_call.1} parent=11 // pred_fallthru
          _
        // Predicated region
        $region29: #{tpu_custom_call.1} parent=11 // pred_check
          %p271 = pneg %p195
        $region30: #{tpu_custom_call.1} parent=11 // pred_check_branch
          %273 = sbr.rel (%p271) target = $region32
        $region31: #{tpu_custom_call.1} parent=11 // pred_region
          _
        $region32: #{tpu_custom_call.1} parent=11 // pred_fallthru
          _
        // Predicated region
        $region33: #{tpu_custom_call.1} parent=11 // pred_check
          %p274 = pneg %p216
        $region34: #{tpu_custom_call.1} parent=11 // pred_check_branch
          %276 = sbr.rel (%p274) target = $region36
        $region35: #{tpu_custom_call.1} parent=11 // pred_region
          _
        $region36: #{tpu_custom_call.1} parent=11 // pred_fallthru
          _
      $region12: #{tpu_custom_call.1} parent=5 // pred_fallthru
        _
      %p277 = scmp.lt.s32.totalorder %s22, 2
      // Predicated region
      $region37: #{tpu_custom_call.1} parent=5 // pred_check
        %p278 = pneg %p277
      $region38: #{tpu_custom_call.1} parent=5 // pred_check_branch
        %280 = sbr.rel (%p278) target = $region40
      $region39: #{tpu_custom_call.1} parent=5 // pred_region
        // Predicated region
        $region41: #{tpu_custom_call.1} parent=39 // pred_check
          %p281 = pneg %p56
        $region42: #{tpu_custom_call.1} parent=39 // pred_check_branch
          %283 = sbr.rel (%p281) target = $region44
        $region43: #{tpu_custom_call.1} parent=39 // pred_region
          %s284 = sand.u32 %s46, 1
          %s285 = scalar_lea.sflag [#allocation4], %s284
          %s286 = sand.u32 %s46, 1
          %s287 = smul.addr %s286, 32
          %s288 = scalar_lea.vmem [#allocation3], %s287
          %s289 = smul.u32 2, %s30
          %291 = vsyncadd %s285, 0
          %s292 = smul.addr %s29, 4
          %s293 = sadd.s32 %s289, %s292
          %s294 = smul.addr %s293, 8
          %s295 = scalar_lea.hbm %s0, %s294
          %s296 = sshll.u32 %s295, 4
          %s297 = int_to_ptr.hbm [resolvable:$true] %s296
          %s298 = sshll.u32 %s288, 4
          %s299 = int_to_ptr.vmem [resolvable:$true] %s298
          %304 = dma.hbm_to_vmem [thread:$0]  %s297, 512, %s299, %s285, 256, 256, 16
        $region44: #{tpu_custom_call.1} parent=39 // pred_fallthru
          _
        // Predicated region
        $region45: #{tpu_custom_call.1} parent=39 // pred_check
          %p305 = pneg %p84
        $region46: #{tpu_custom_call.1} parent=39 // pred_check_branch
          %307 = sbr.rel (%p305) target = $region48
        $region47: #{tpu_custom_call.1} parent=39 // pred_region
          %s308 = smul.u32 2, %s30
          %p309 = scmp.lt.s32.totalorder %s29, 1
          %s310 = scalar_select %p309, %s29, 1
          %p311 = scmp.lt.s32.totalorder %s308, 1
          %s312 = scalar_select %p311, %s308, 1
          %s313 = smul.addr %s310, 2
          %s314 = sadd.s32 %s312, %s313
          %s315 = smul.addr %s314, 8
          %s316 = scalar_lea.vmem %s1, %s315
          %s317 = smul.u32 2, %s30
        $region48: #{tpu_custom_call.1} parent=39 // pred_fallthru
          _
      $region40: #{tpu_custom_call.1} parent=5 // pred_fallthru
        _
      %p318 = scmp.le.s32.totalorder 1, %s22
      %p319 = scmp.lt.s32.totalorder %s22, 3
      %p320 = pnand %p318, %p319
      %p321 = pneg %p320
      // Predicated region
      $region49: #{tpu_custom_call.1} parent=5 // pred_check
        _
      $region50: #{tpu_custom_call.1} parent=5 // pred_check_branch
        %323 = sbr.rel (%p320) target = $region52
      $region51: #{tpu_custom_call.1} parent=5 // pred_region
        %s324 = ssub.s32 %s22, 1
        %s325 = sand.u32 %s49, 1
        %s326 = scalar_lea.sflag [#allocation4], %s325
        %s327 = sand.u32 %s49, 1
        %s328 = smul.addr %s327, 32
        %s329 = scalar_lea.vmem [#allocation3], %s328
        // Predicated region
        $region53: #{tpu_custom_call.1} parent=51 // pred_check
          %p330 = pneg %p62
        $region54: #{tpu_custom_call.1} parent=51 // pred_check_branch
          %332 = sbr.rel (%p330) target = $region56
        $region55: #{tpu_custom_call.1} parent=51 // pred_region
          %334 = dma.done %s326, 512
        $region56: #{tpu_custom_call.1} parent=51 // pred_fallthru
          _
        %s335 = sand.u32 %s49, 1
        %s336 = scalar_lea.sflag [#allocation4], %s335
        %s337 = sand.u32 %s49, 1
        %s338 = smul.addr %s337, 32
        %s339 = scalar_lea.vmem [#allocation3], %s338
        %p340 = pneg %p62
        %p341 = pneg %p59
        %s342 = smul.u32 2, %s32
        %p343 = scmp.lt.s32.totalorder %s31, 1
        %s344 = scalar_select %p343, %s31, 1
        %p345 = scmp.lt.s32.totalorder %s342, 1
        %s346 = scalar_select %p345, %s342, 1
        %s347 = smul.addr %s344, 2
        %s348 = sadd.s32 %s346, %s347
        %s349 = smul.addr %s348, 8
        %s350 = scalar_lea.vmem %s1, %s349
        %p351 = pneg %p90
        %p352 = pneg %p87
        %p353 = pneg %p111
        %p354 = pneg %p108
        %p355 = pneg %p132
        %p356 = pneg %p129
        %p357 = pneg %p153
        %p358 = pneg %p150
        %p359 = pneg %p174
        %p360 = pneg %p171
        %p361 = pneg %p195
        %p362 = pneg %p192
        %p363 = pneg %p216
        %p364 = pneg %p213
        %p365 = pneg %p244
        %p366 = pneg %p241
        %s367 = sand.u32 %s231, 1
        %s368 = scalar_lea.sflag [#allocation5], %s367
        %s369 = sand.u32 %s231, 1
        %s370 = smul.addr %s369, 32
        %s371 = scalar_lea.vmem [#allocation6], %s370
        %s372 = smul.u32 2, %s32
        %s373 = smul.u32 2, %s32
        %p374 = scmp.lt.s32.totalorder %s31, 1
        %s375 = scalar_select %p374, %s31, 1
        %p376 = scmp.lt.s32.totalorder %s373, 1
        %s377 = scalar_select %p376, %s373, 1
        %s378 = smul.addr %s375, 2
        %s379 = sadd.s32 %s377, %s378
        %s380 = smul.addr %s379, 8
        %s381 = scalar_lea.vmem %s1, %s380
        %s382 = smul.u32 2, %s32
        %s383 = smul.u32 2, %s32
        %v384 = vld [vmem:[%s2] sm:$0xf]
        %v385 = vld [vmem:[%s3] sm:$0xff]
        %v386 = vld [vmem:[%s3 + $0x8] sm:$0xff]
        %v387 = vld [vmem:[%s3 + $0x10] sm:$0xff]
        %v388 = vld [vmem:[%s4] sm:$0xff]
        %v389 = vld [vmem:[%s4 + $0x8] sm:$0xff]
        %v390 = vld [vmem:[%s4 + $0x10] sm:$0xff]
        %v391 = vld [vmem:[%s5] sm:$0xf]
        %v392 = vld [vmem:[%s6] sm:$0x1]
        %v393 = vld [vmem:[#allocation2] sm:$0x1]
        %v394 = vld [vmem:[%s329] sm:$0xff]
        %v395 = vld [vmem:[%s329 + $0x8] sm:$0xff]
        %v396 = vld [vmem:[%s329 + $0x10] sm:$0xff]
        %v397 = vld [vmem:[%s329 + $0x18] sm:$0xff]
        %v398 = vld [vmem:[%s381] sm:$0xff]
        %v399 = vld [vmem:[%s381 + $0x8] sm:$0xff]
        %401 = vset.pattern.permute.xlu0 0
        %402 = vperm.xlu0 %401, %v388
        %v403 = vpop.permute.xlu0 %402
        %406 = vset.pattern.permute.xlu0 0
        %407 = vperm.xlu0 %406, %v389
        %v408 = vpop.permute.xlu0 %407
        %411 = vset.pattern.permute.xlu0 0
        %412 = vperm.xlu0 %411, %v390
        %v413 = vpop.permute.xlu0 %412
        %vm415 = vcmask 64512
        %v417 = vsel %vm415, %v385, 0
        %v420 = vsel %vm415, %v386, 0
        %v423 = vsel %vm415, %v387, 0
        %425 = vmatpush.msra.mxu0 0.0
        %426 = vmatpush.msra.mxu0 0.0
        %427 = vmatpush.msra.mxu0 0.0
        %428 = vmatpush.msra.mxu0 0.0
        %429 = vmatpush.msra.mxu0 0.0
        %430 = vmatpush.msra.mxu0 0.0
        %431 = vmatpush.msra.mxu0 0.0
        %432 = vmatpush.msra.mxu0 0.0
        %433 = vmatpush.msra.mxu0 0.0
        %434 = vmatpush.msra.mxu0 0.0
        %435 = vmatpush.msra.mxu0 0.0
        %436 = vmatpush.msra.mxu0 0.0
        %437 = vmatpush.msra.mxu0 0.0
        %438 = vmatpush.msra.mxu0 0.0
        %439 = vmatpush.msra.mxu0 0.0
        %440 = vmatpush.msra.mxu0 %v398
        %441 = vmatmul.f32.gmra.mxu0 %v417
        %v442 = vpop.f32.mrf.mxu0
        %v443 = vadd.f32 %v403, %v442
        %444 = vmatmul.f32.gmra.mxu0 %v420
        %v445 = vpop.f32.mrf.mxu0
        %v446 = vadd.f32 %v408, %v445
        %447 = vmatmul.f32.gmra.mxu0 %v423
        %v448 = vpop.f32.mrf.mxu0
        %v449 = vadd.f32 %v413, %v448
        %450 = vdwg.mxu0
        %451 = vmatpush.msra.mxu0 0.0
        %452 = vmatpush.msra.mxu0 0.0
        %453 = vmatpush.msra.mxu0 0.0
        %454 = vmatpush.msra.mxu0 0.0
        %455 = vmatpush.msra.mxu0 0.0
        %456 = vmatpush.msra.mxu0 0.0
        %457 = vmatpush.msra.mxu0 0.0
        %458 = vmatpush.msra.mxu0 0.0
        %459 = vmatpush.msra.mxu0 0.0
        %460 = vmatpush.msra.mxu0 0.0
        %461 = vmatpush.msra.mxu0 0.0
        %462 = vmatpush.msra.mxu0 0.0
        %463 = vmatpush.msra.mxu0 0.0
        %464 = vmatpush.msra.mxu0 0.0
        %465 = vmatpush.msra.mxu0 0.0
        %466 = vmatpush.msra.mxu0 %v399
        %467 = vmatmul.f32.gmra.mxu0 %v417
        %v468 = vpop.f32.mrf.mxu0
        %v469 = vadd.f32 %v403, %v468
        %470 = vmatmul.f32.gmra.mxu0 %v420
        %v471 = vpop.f32.mrf.mxu0
        %v472 = vadd.f32 %v408, %v471
        %473 = vmatmul.f32.gmra.mxu0 %v423
        %v474 = vpop.f32.mrf.mxu0
        %v475 = vadd.f32 %v413, %v474
        %476 = vdwg.mxu0
        %v477 = vmax.f32 %v443, 0.0
        %v478 = vmax.f32 %v469, 0.0
        %v479 = vmax.f32 %v446, 0.0
        %v480 = vmax.f32 %v472, 0.0
        %vm481 = vcmask 130048
        %v483 = vsel %vm481, %v384, 0
        %485 = vmatpush.msra.mxu0 0.0
        %486 = vmatpush.msra.mxu0 0.0
        %487 = vmatpush.msra.mxu0 0.0
        %488 = vmatpush.msra.mxu0 0.0
        %489 = vmatpush.msra.mxu0 0.0
        %490 = vmatpush.msra.mxu0 0.0
        %491 = vmatpush.msra.mxu0 0.0
        %492 = vmatpush.msra.mxu0 0.0
        %493 = vmatpush.msra.mxu0 0.0
        %494 = vmatpush.msra.mxu0 0.0
        %495 = vmatpush.msra.mxu0 0.0
        %496 = vmatpush.msra.mxu0 0.0
        %497 = vmatpush.msra.mxu0 0.0
        %498 = vmatpush.msra.mxu0 0.0
        %499 = vmatpush.msra.mxu0 %v396
        %500 = vmatpush.msra.mxu0 %v394
        %501 = vmatmul.f32.gmra.mxu0 %v483
        %v502 = vpop.f32.mrf.mxu0
        %v503 = vadd.f32 %v449, %v502
        %504 = vdwg.mxu0
        %505 = vmatpush.msra.mxu0 0.0
        %506 = vmatpush.msra.mxu0 0.0
        %507 = vmatpush.msra.mxu0 0.0
        %508 = vmatpush.msra.mxu0 0.0
        %509 = vmatpush.msra.mxu0 0.0
        %510 = vmatpush.msra.mxu0 0.0
        %511 = vmatpush.msra.mxu0 0.0
        %512 = vmatpush.msra.mxu0 0.0
        %513 = vmatpush.msra.mxu0 0.0
        %514 = vmatpush.msra.mxu0 0.0
        %515 = vmatpush.msra.mxu0 0.0
        %516 = vmatpush.msra.mxu0 0.0
        %517 = vmatpush.msra.mxu0 0.0
        %518 = vmatpush.msra.mxu0 0.0
        %519 = vmatpush.msra.mxu0 %v397
        %520 = vmatpush.msra.mxu0 %v395
        %521 = vmatmul.f32.gmra.mxu0 %v483
        %v522 = vpop.f32.mrf.mxu0
        %v523 = vadd.f32 %v475, %v522
        %524 = vdwg.mxu0
        %526 = vset.pattern.permute.xlu0 0
        %527 = vperm.xlu0 %526, %v391
        %v528 = vpop.permute.xlu0 %527
        %v530 = vadd.f32 %v503, %v528
        %v531 = vadd.f32 %v523, %v528
        %v532 = vtanh.pop %v530
        %v533 = vtanh.pop %v531
        %535 = vset.pattern.permute.xlu0 0
        %536 = vperm.xlu0 %535, %v393
        %v537 = vpop.permute.xlu0 %536
        %v539 = vperm.slane %v537, 0
        %vm540 = vcmask 31744
        %v542 = vsel %vm540, %v392, 0
        %vm544 = vcmask 1043456
        %v546 = vsel %vm544, %v532, 0
        %v549 = vsel %vm544, %v533, 0
        %551 = vmatpush.msra.mxu0 0.0
        %552 = vmatpush.msra.mxu0 0.0
        %553 = vmatpush.msra.mxu0 0.0
        %554 = vmatpush.msra.mxu0 0.0
        %555 = vmatpush.msra.mxu0 0.0
        %556 = vmatpush.msra.mxu0 0.0
        %557 = vmatpush.msra.mxu0 0.0
        %558 = vmatpush.msra.mxu0 0.0
        %559 = vmatpush.msra.mxu0 0.0
        %560 = vmatpush.msra.mxu0 0.0
        %561 = vmatpush.msra.mxu0 0.0
        %562 = vmatpush.msra.mxu0 0.0
        %563 = vmatpush.msra.mxu0 0.0
        %564 = vmatpush.msra.mxu0 0.0
        %565 = vmatpush.msra.mxu0 0.0
        %566 = vmatpush.msra.mxu0 %v546
        %567 = vmatmul.f32.gmra.mxu0 %v542
        %v568 = vpop.f32.mrf.mxu0
        %v569 = vadd.f32 %v539, %v568
        %570 = vdwg.mxu0
        %571 = vmatpush.msra.mxu0 0.0
        %572 = vmatpush.msra.mxu0 0.0
        %573 = vmatpush.msra.mxu0 0.0
        %574 = vmatpush.msra.mxu0 0.0
        %575 = vmatpush.msra.mxu0 0.0
        %576 = vmatpush.msra.mxu0 0.0
        %577 = vmatpush.msra.mxu0 0.0
        %578 = vmatpush.msra.mxu0 0.0
        %579 = vmatpush.msra.mxu0 0.0
        %580 = vmatpush.msra.mxu0 0.0
        %581 = vmatpush.msra.mxu0 0.0
        %582 = vmatpush.msra.mxu0 0.0
        %583 = vmatpush.msra.mxu0 0.0
        %584 = vmatpush.msra.mxu0 0.0
        %585 = vmatpush.msra.mxu0 0.0
        %586 = vmatpush.msra.mxu0 %v549
        %587 = vmatmul.f32.gmra.mxu0 %v542
        %v588 = vpop.f32.mrf.mxu0
        %v589 = vadd.f32 %v539, %v588
        %590 = vdwg.mxu0
        %v591 = vxor.u32 %v569, 2147483648
        %v592 = vxor.u32 %v589, 2147483648
        %v593 = vmul.f32 %v591, 1.442695
        %v594 = vpow.pop %v593
        %v595 = vmul.f32 %v592, 1.442695
        %v596 = vpow.pop %v595
        %v597 = vadd.f32 %v594, 1.0
        %v598 = vadd.f32 %v596, 1.0
        %v599 = vrcp.pop %v597
        %v600 = vmul.f32 %v597, %v599
        %v601 = vsub.f32 1.0, %v600
        %v602 = vmul.f32 %v599, %v601
        %v603 = vadd.f32 %v599, %v602
        %vm604 = vweird.f32 %v597
        %vm605 = vweird.f32 %v599
        %vm606 = vmor %vm604, %vm605
        %v607 = vsel %vm606, %v599, %v603
        %v608 = vand.u32 2147483647, %v597
        %vm609 = vcmp.eq.f32.partialorder %v608, 8.507059e+37
        %v610 = vand.u32 %v597, 2147483648
        %v611 = vor.u32 1.1754944e-38, %v610
        %v612 = vsel %vm609, %v611, %v607
        %v613 = vmul.f32 1.0, %v612
        %v614 = vrcp.pop %v598
        %v615 = vmul.f32 %v598, %v614
        %v616 = vsub.f32 1.0, %v615
        %v617 = vmul.f32 %v614, %v616
        %v618 = vadd.f32 %v614, %v617
        %vm619 = vweird.f32 %v598
        %vm620 = vweird.f32 %v614
        %vm621 = vmor %vm619, %vm620
        %v622 = vsel %vm621, %v614, %v618
        %v623 = vand.u32 2147483647, %v598
        %vm624 = vcmp.eq.f32.partialorder %v623, 8.507059e+37
        %v625 = vand.u32 %v598, 2147483648
        %v626 = vor.u32 1.1754944e-38, %v625
        %v627 = vsel %vm624, %v626, %v622
        %v628 = vmul.f32 1.0, %v627
        %v629 = vperm.slane %v613, 0
        %v630 = vperm.slane %v628, 0
        %v631 = vmul.f32 %v477, %v629
        %v632 = vmul.f32 %v478, %v630
        %v633 = vmul.f32 %v479, %v629
        %v634 = vmul.f32 %v480, %v630
        %635 = vst [vmem:[%s371] sm:$0xff] %v631
        %636 = vst [vmem:[%s371 + $0x8] sm:$0xff] %v632
        %637 = vst [vmem:[%s371 + $0x10] sm:$0xff] %v633
        %638 = vst [vmem:[%s371 + $0x18] sm:$0xff] %v634
        %s639 = sand.u32 %s231, 1
        %s640 = scalar_lea.sflag [#allocation5], %s639
        %s641 = sand.u32 %s231, 1
        %s642 = smul.addr %s641, 32
        %s643 = scalar_lea.vmem [#allocation6], %s642
        // Predicated region
        $region57: #{tpu_custom_call.1} parent=51 // pred_check
          %p644 = pneg %p241
        $region58: #{tpu_custom_call.1} parent=51 // pred_check_branch
          %646 = sbr.rel (%p644) target = $region60
        $region59: #{tpu_custom_call.1} parent=51 // pred_region
          %s647 = smul.u32 2, %s32
          %649 = vsyncadd %s640, 0
          %s650 = smul.addr %s31, 4
          %s651 = sadd.s32 %s647, %s650
          %s652 = smul.addr %s651, 8
          %s653 = scalar_lea.hbm %s8, %s652
          %s654 = sshll.u32 %s643, 4
          %s655 = int_to_ptr.vmem [resolvable:$true] %s654
          %s656 = sshll.u32 %s653, 4
          %s657 = int_to_ptr.hbm [resolvable:$true] %s656
          %662 = dma.vmem_to_hbm [thread:$0]  %s655, 512, %s657, %s640, 256, 256, 16
        $region60: #{tpu_custom_call.1} parent=51 // pred_fallthru
          _
      $region52: #{tpu_custom_call.1} parent=5 // pred_fallthru
        _
      %p663 = scmp.le.s32.totalorder 2, %s22
      // Predicated region
      $region61: #{tpu_custom_call.1} parent=5 // pred_check
        %p664 = pneg %p663
      $region62: #{tpu_custom_call.1} parent=5 // pred_check_branch
        %666 = sbr.rel (%p664) target = $region64
      $region63: #{tpu_custom_call.1} parent=5 // pred_region
        %s667 = ssub.s32 %s22, 2
        // Predicated region
        $region65: #{tpu_custom_call.1} parent=63 // pred_check
          %p668 = pneg %p247
        $region66: #{tpu_custom_call.1} parent=63 // pred_check_branch
          %670 = sbr.rel (%p668) target = $region68
        $region67: #{tpu_custom_call.1} parent=63 // pred_region
          %s671 = sand.u32 %s232, 1
          %s672 = scalar_lea.sflag [#allocation5], %s671
          %s673 = sand.u32 %s232, 1
          %s674 = smul.addr %s673, 32
          %s675 = scalar_lea.vmem [#allocation6], %s674
          %677 = dma.done %s672, 512
        $region68: #{tpu_custom_call.1} parent=63 // pred_fallthru
          _
      $region64: #{tpu_custom_call.1} parent=5 // pred_fallthru
        _
    $region6: #{tpu_custom_call.1} parent=1 // loop_footer
      %s26 = sadd.s32 1, %s22
    $region7: #{tpu_custom_call.1} parent=1 // loop_footer_branch
      %21 = sbr.rel target = $region3
    $region8: #{tpu_custom_call.1} parent=1 // loop_exit
      _
    %678 = vsyncpa [#allocation4], 1
    %s679 = scalar_lea.sflag [#allocation4], 1
    %680 = vsyncpa %s679, 1
    %681 = vsyncpa [#allocation5], 1
    %s682 = scalar_lea.sflag [#allocation5], 1
    %683 = vsyncpa %s682, 1

</llo_original>
